<compile_context>
chip_gen: v6e
topology: v6e:2x2x1
jax: 0.10.0
libtpu: 0.0.40
codegen_flags: <defaults>
</compile_context>

<pallas_src>
import functools

import jax
import jax.numpy as jnp
from jax.experimental import pallas as pl
from jax.experimental.pallas import tpu as pltpu


def _round_up(x, m):
    return ((x + m - 1) // m) * m


def _fused_proto_kernel(x_ref, w_ref, o_ref):
    # x_ref: [Bt, Dp], w_ref: [Dp, Kt], o_ref: [Bt, Kt] -- all VMEM tiles.
    o_ref[...] = jnp.dot(
        x_ref[...], w_ref[...], preferred_element_type=jnp.float32
    ).astype(o_ref.dtype)


def fused_prototype_matmul(x_padded, w_padded, *, bt, kt):
    """x_padded [Bp, Dp] @ w_padded [Dp, Kp] -> [Bp, Kp], tiled over (B, K)."""
    Bp, Dp = x_padded.shape
    Dp2, Kp = w_padded.shape
    assert Dp == Dp2
    assert Bp % bt == 0 and Kp % kt == 0

    grid = (Bp // bt, Kp // kt)
    return pl.pallas_call(
        _fused_proto_kernel,
        out_shape=jax.ShapeDtypeStruct((Bp, Kp), x_padded.dtype),
        grid_spec=pl.GridSpec(
            grid=grid,
            in_specs=[
                pl.BlockSpec((bt, Dp), lambda i, j: (i, 0)),
                pl.BlockSpec((Dp, kt), lambda i, j: (0, j)),
            ],
            out_specs=pl.BlockSpec((bt, kt), lambda i, j: (i, j)),
        ),
        compiler_params=pltpu.CompilerParams(
            dimension_semantics=("parallel", "parallel"),
        ),
    )(x_padded, w_padded)


class MultiPrototypes:
    """JAX/Pallas port of the PyTorch MultiPrototypes module."""

    def __init__(self, output_dim, nmb_prototypes, key):
        self.output_dim = int(output_dim)
        self.nmb_prototypes = [int(k) for k in nmb_prototypes]
        self.nmb_heads = len(self.nmb_prototypes)

        # Per-head weights in PyTorch Linear layout [k_i, D] (kept for
        # reference / export parity).
        self.weights = []
        bound = 1.0 / float(output_dim) ** 0.5
        for k in self.nmb_prototypes:
            key, sub = jax.random.split(key)
            w = jax.random.uniform(
                sub, (k, output_dim), dtype=jnp.float32, minval=-bound, maxval=bound
            )
            self.weights.append(w)

        # ---- one-time fused + padded weight layout --------------------------
        self.k_total = sum(self.nmb_prototypes)
        offsets, off = [], 0
        for k in self.nmb_prototypes:
            offsets.append(off)
            off += k
        self.offsets = tuple(offsets)

        self.d_pad = _round_up(self.output_dim, 128)
        k_pad = _round_up(self.k_total, 128)
        # Output tile width: biggest of 512/256/128 that divides the padded K
        # (256 keeps the v6e/v7x 256-wide MXU full; 128 is the v5e floor).
        if k_pad % 512 == 0:
            self.kt = 512
        elif k_pad % 256 == 0:
            self.kt = 256
        else:
            self.kt = 128
        self.k_pad = k_pad

        # [D, K_total] = concat of per-head W_i.T, zero-padded to [Dp, Kp].
        w_cat_t = jnp.concatenate([w.T for w in self.weights], axis=1)
        self.w_fused = (
            jnp.zeros((self.d_pad, self.k_pad), jnp.float32)
            .at[: self.output_dim, : self.k_total]
            .set(w_cat_t)
        )

        # ---- jitted forward closure (padding + fused matmul + slicing) ------
        d_pad = self.d_pad
        kt = self.kt
        out_dim = self.output_dim
        head_offsets = self.offsets
        head_ks = tuple(self.nmb_prototypes)

        def _forward(x, w_fused):
            B, D = x.shape
            assert D == out_dim
            # Batch tile: cap at 512, keep a multiple of 8 (sublane).
            bt = 512 if B >= 512 else _round_up(B, 8)
            b_pad = _round_up(B, bt)
            # Zero-pad x once; zero rows/cols are mathematically inert for a
            # bias-free linear and are sliced off below.
            xp = jnp.zeros((b_pad, d_pad), x.dtype).at[:B, :D].set(x)
            out_full = fused_prototype_matmul(xp, w_fused, bt=bt, kt=kt)
            return tuple(
                out_full[:B, o : o + k] for o, k in zip(head_offsets, head_ks)
            )

        self._forward = jax.jit(_forward)

    def __call__(self, x):
        return list(self._forward(x, self.w_fused))


if __name__ == "__main__":
    key = jax.random.PRNGKey(0)
    key, xkey = jax.random.split(key)

    batch = 8
    output_dim = 32
    nmb_prototypes = [16, 24, 8]

    x = jax.random.normal(xkey, (batch, output_dim), dtype=jnp.float32)

    model = MultiPrototypes(output_dim, nmb_prototypes, key)
    outs = model(x)
    outs = [jax.block_until_ready(o) for o in outs]

    # Sanity check against plain JAX reference (per-head x @ W_i.T).
    for o, w in zip(outs, model.weights):
        ref = x @ w.T
        assert o.shape == ref.shape, (o.shape, ref.shape)
        assert jnp.allclose(o, ref, atol=1e-5, rtol=1e-5)

    print("KERNEL_OK")
</pallas_src>

<mosaic_0001>
module attributes {stable_mosaic.version = 11 : i64} {
  func.func @_fused_proto_kernel(%arg0: i32, %arg1: i32, %arg2: memref<8x128xf32, #tpu.memory_space<vmem>>, %arg3: memref<128x128xf32, #tpu.memory_space<vmem>>, %arg4: memref<8x128xf32, #tpu.memory_space<vmem>>) attributes {dimension_semantics = [#tpu.dimension_semantics<parallel>, #tpu.dimension_semantics<parallel>], iteration_bounds = array<i64: 1, 1>, scalar_prefetch = 0 : i64, scratch_operands = 0 : i64, tpu.core_type = #tpu.core_type<tc>, window_params = [{transform_indices = @transform_0, window_bounds = array<i64: 8, 128>}, {transform_indices = @transform_1, window_bounds = array<i64: 128, 128>}, {transform_indices = @transform_2, window_bounds = array<i64: 8, 128>}]} {
    %c0 = arith.constant 0 : index
    %c0_0 = arith.constant 0 : index
    %0 = vector.load %arg2[%c0, %c0_0] : memref<8x128xf32, #tpu.memory_space<vmem>>, vector<8x128xf32>
    %c0_1 = arith.constant 0 : index
    %c0_2 = arith.constant 0 : index
    %1 = vector.load %arg3[%c0_1, %c0_2] : memref<128x128xf32, #tpu.memory_space<vmem>>, vector<128x128xf32>
    %cst = arith.constant dense<0.000000e+00> : vector<8x128xf32>
    %2 = tpu.matmul %0, %1, %cst {dimension_numbers = #tpu.dot_dimension_numbers<[1], [0], [0], [1], [0, 0, 1, 1], [], []>} : vector<8x128xf32>, vector<128x128xf32>, vector<8x128xf32> -> vector<8x128xf32>
    %c0_3 = arith.constant 0 : index
    %c0_4 = arith.constant 0 : index
    %3 = vector.load %arg4[%c0_3, %c0_4] : memref<8x128xf32, #tpu.memory_space<vmem>>, vector<8x128xf32>
    tpu.vector_store %arg4[%c0_3, %c0_4], %2 {strides = array<i32>} : memref<8x128xf32, #tpu.memory_space<vmem>>, vector<8x128xf32>,
    return
  }
  func.func @transform_0(%arg0: i32, %arg1: i32) -> (i32, i32) {
    %c0_i32 = arith.constant 0 : i32
    %c0_i32_0 = arith.constant 0 : i32
    return %arg0, %c0_i32 : i32, i32
  }
  func.func @transform_1(%arg0: i32, %arg1: i32) -> (i32, i32) {
    %c0_i32 = arith.constant 0 : i32
    %c0_i32_0 = arith.constant 0 : i32
    return %c0_i32, %arg1 : i32, i32
  }
  func.func @transform_2(%arg0: i32, %arg1: i32) -> (i32, i32) {
    %c0_i32 = arith.constant 0 : i32
    return %arg0, %arg1 : i32, i32
  }
}

</mosaic_0001>

<llo_original>
// kernel: _forward.1
$region0: #{_forward.1}
  #allocation0 [shape = 'u32[]', space=smem, size = 0x4, offset = 0x4, fixed_abs, tag = 'smem constant byte address 0x4 - core index']
  #allocation1 [shape = 'u32[144,128]{1,0:T(1,128)}', space=vmem, size = 0x12000, scoped, tag = 'internal scratch']
  %s0 = inlined_call_operand.vmem [shape: f32[8,128], index: 0, kind: input, shape index: {}]
  %s1 = inlined_call_operand.hbm [shape: f32[128,128], index: 1, kind: input, shape index: {}]
  %s2 = inlined_call_operand.vmem [shape: f32[8,128], index: 2, kind: output, shape index: {}]
  %s3 = sld [smem:[#allocation0]]
  $region22: #{_forward.1} parent=0
    _
  %s5 = ssub.s32 1, %s3
  %s6 = scalar_select 0, %s5, %s3
  $region1: #{_forward.1} parent=0
    #allocation2 [shape = 'u8[65536]{0}', space=vmem, size = 0x10000, scoped, tag = 'input window, operand 1, single buffered']
    #allocation3 [shape = 's32[1]{0}', space=sflag, size = 0x4, scoped, tag = 'scoped memory for _forward.1']
    %7 = vsyncpa [#allocation3], 0
    // Predicated region
    $region2: #{_forward.1} parent=1 // pred_check
      _
    $region3: #{_forward.1} parent=1 // pred_check_branch
      %9 = sbr.rel (0) target = $region5
    $region4: #{_forward.1} parent=1 // pred_region
      _
    $region5: #{_forward.1} parent=1 // pred_fallthru
      _
    // Predicated region
    $region6: #{_forward.1} parent=1 // pred_check
      _
    $region7: #{_forward.1} parent=1 // pred_check_branch
      %11 = sbr.rel (0) target = $region9
    $region8: #{_forward.1} parent=1 // pred_region
      %s13 = ssub.s32 2048, 2048
      %14 = vsyncadd [#allocation3], %s13
      %s15 = sshll.u32 [#allocation2], 4
      %s16 = int_to_ptr.vmem [resolvable:$true] %s15
      %21 = dma.hbm_to_vmem [thread:$0]  %s1, 2048, %s16, [#allocation3], 128, 128, 8
    $region9: #{_forward.1} parent=1 // pred_fallthru
      _
    // Predicated region
    $region10: #{_forward.1} parent=1 // pred_check
      _
    $region11: #{_forward.1} parent=1 // pred_check_branch
      %23 = sbr.rel (0) target = $region13
    $region12: #{_forward.1} parent=1 // pred_region
      %24 = dma.done [#allocation3], 2048
    $region13: #{_forward.1} parent=1 // pred_fallthru
      _
    %v25 = vld [vmem:[%s0] sm:$0xff]
    %v26 = vld [vmem:[#allocation2] sm:$0xff]
    %v27 = vld [vmem:[#allocation2 + $0x8] sm:$0xff]
    %v28 = vld [vmem:[#allocation2 + $0x10] sm:$0xff]
    %v29 = vld [vmem:[#allocation2 + $0x18] sm:$0xff]
    %v30 = vld [vmem:[#allocation2 + $0x20] sm:$0xff]
    %v31 = vld [vmem:[#allocation2 + $0x28] sm:$0xff]
    %v32 = vld [vmem:[#allocation2 + $0x30] sm:$0xff]
    %v33 = vld [vmem:[#allocation2 + $0x38] sm:$0xff]
    %v34 = vld [vmem:[#allocation2 + $0x40] sm:$0xff]
    %v35 = vld [vmem:[#allocation2 + $0x48] sm:$0xff]
    %v36 = vld [vmem:[#allocation2 + $0x50] sm:$0xff]
    %v37 = vld [vmem:[#allocation2 + $0x58] sm:$0xff]
    %v38 = vld [vmem:[#allocation2 + $0x60] sm:$0xff]
    %v39 = vld [vmem:[#allocation2 + $0x68] sm:$0xff]
    %v40 = vld [vmem:[#allocation2 + $0x70] sm:$0xff]
    %v41 = vld [vmem:[#allocation2 + $0x78] sm:$0xff]
    %42 = vmatprep.subr.mxu0 0.0
    %43 = vmatpush1.msra.mxu0 %v41
    %44 = vmatprep.subr.mxu0 0.0
    %45 = vmatpush1.msra.mxu0 %v40
    %46 = vmatprep.subr.mxu0 0.0
    %47 = vmatpush1.msra.mxu0 %v39
    %48 = vmatprep.subr.mxu0 0.0
    %49 = vmatpush1.msra.mxu0 %v38
    %50 = vmatprep.subr.mxu0 0.0
    %51 = vmatpush1.msra.mxu0 %v37
    %52 = vmatprep.subr.mxu0 0.0
    %53 = vmatpush1.msra.mxu0 %v36
    %54 = vmatprep.subr.mxu0 0.0
    %55 = vmatpush1.msra.mxu0 %v35
    %56 = vmatprep.subr.mxu0 0.0
    %57 = vmatpush1.msra.mxu0 %v34
    %58 = vmatprep.subr.mxu0 0.0
    %59 = vmatpush1.msra.mxu0 %v33
    %60 = vmatprep.subr.mxu0 0.0
    %61 = vmatpush1.msra.mxu0 %v32
    %62 = vmatprep.subr.mxu0 0.0
    %63 = vmatpush1.msra.mxu0 %v31
    %64 = vmatprep.subr.mxu0 0.0
    %65 = vmatpush1.msra.mxu0 %v30
    %66 = vmatprep.subr.mxu0 0.0
    %67 = vmatpush1.msra.mxu0 %v29
    %68 = vmatprep.subr.mxu0 0.0
    %69 = vmatpush1.msra.mxu0 %v28
    %70 = vmatprep.subr.mxu0 0.0
    %71 = vmatpush1.msra.mxu0 %v27
    %72 = vmatprep.subr.mxu0 0.0
    %73 = vmatpush1.msra.mxu0 %v26
    %74 = vmatprep.subr.mxu0 0.0
    %75 = vmatpush2.msra.mxu0 0.0
    %76 = vmatprep.subr.mxu0 0.0
    %77 = vmatpush2.msra.mxu0 0.0
    %78 = vmatprep.subr.mxu0 0.0
    %79 = vmatpush2.msra.mxu0 0.0
    %80 = vmatprep.subr.mxu0 0.0
    %81 = vmatpush2.msra.mxu0 0.0
    %82 = vmatprep.subr.mxu0 0.0
    %83 = vmatpush2.msra.mxu0 0.0
    %84 = vmatprep.subr.mxu0 0.0
    %85 = vmatpush2.msra.mxu0 0.0
    %86 = vmatprep.subr.mxu0 0.0
    %87 = vmatpush2.msra.mxu0 0.0
    %88 = vmatprep.subr.mxu0 0.0
    %89 = vmatpush2.msra.mxu0 0.0
    %90 = vmatprep.subr.mxu0 0.0
    %91 = vmatpush2.msra.mxu0 0.0
    %92 = vmatprep.subr.mxu0 0.0
    %93 = vmatpush2.msra.mxu0 0.0
    %94 = vmatprep.subr.mxu0 0.0
    %95 = vmatpush2.msra.mxu0 0.0
    %96 = vmatprep.subr.mxu0 0.0
    %97 = vmatpush2.msra.mxu0 0.0
    %98 = vmatprep.subr.mxu0 0.0
    %99 = vmatpush2.msra.mxu0 0.0
    %100 = vmatprep.subr.mxu0 0.0
    %101 = vmatpush2.msra.mxu0 0.0
    %102 = vmatprep.subr.mxu0 0.0
    %103 = vmatpush2.msra.mxu0 0.0
    %104 = vmatprep.subr.mxu0 0.0
    %105 = vmatpush2.msra.mxu0 0.0
    %106 = vmatprep.mubr.f32.mxu0 0.0
    %107 = vmatmul.mubr.f32.gmra.mxu0 %v25
    %v108 = vpop.f32.mrf.mxu0
    %v109 = vadd.f32 0.0, %v108
    %v110 = vpop.f32.mrf.mxu0
    %111 = vdwg.mxu0
    %112 = vst [vmem:[%s2] sm:$0xff] %v109
    // Predicated region
    $region14: #{_forward.1} parent=1 // pred_check
      _
    $region15: #{_forward.1} parent=1 // pred_check_branch
      %114 = sbr.rel (0) target = $region17
    $region16: #{_forward.1} parent=1 // pred_region
      _
    $region17: #{_forward.1} parent=1 // pred_fallthru
      _
    // Predicated region
    $region18: #{_forward.1} parent=1 // pred_check
      _
    $region19: #{_forward.1} parent=1 // pred_check_branch
      %116 = sbr.rel (0) target = $region21
    $region20: #{_forward.1} parent=1 // pred_region
      _
    $region21: #{_forward.1} parent=1 // pred_fallthru
      _
    %117 = vsyncpa [#allocation3], 1

</llo_original>
